<compile_context>
chip_gen: v7x
topology: tpu7x:2x2x1
jax: 0.10.0
libtpu: 0.0.40
codegen_flags: <defaults>
</compile_context>

<pallas_src>
import jax
import jax.numpy as jnp
from jax.experimental import pallas as pl
from jax.experimental.pallas import tpu as pltpu


def _round_up(x, m):
    return ((x + m - 1) // m) * m


# ----------------------------------------------------------------------------
# Kernel: one (batch block, time chunk) per grid step.
# ----------------------------------------------------------------------------
def _gru_chunk_kernel(maxlen_ref,  # SMEM (1,) int32       max(length): clamps inner loop
                      x_ref,       # VMEM (Tc*Bb, Dp)      mm_dtype  time-major embedded inputs
                      len_ref,     # VMEM (Bb, 1) int32    per-row lengths (0 on pad rows)
                      w_ih_ref,    # VMEM (Dp, 3*Hp)       mm_dtype  input->gates (r,z,n Hp blocks)
                      w_hh_ref,    # VMEM (Hp, 3*Hp) f32   hidden->gates
                      b_gi_ref,    # VMEM (1, 3*Hp)  f32   b_ih + [b_hr, b_hz, 0] (folded)
                      b_hn_ref,    # VMEM (1, Hp)    f32   n-gate hidden bias (kept separate)
                      w_fc_ref,    # VMEM (Hp, Fp)   f32   bio_scoring weight
                      b_fc_ref,    # VMEM (1, Fp)    f32
                      out_ref,     # VMEM (Bb, Fp)   f32
                      gi_ref,      # VMEM scratch (Tc*Bb, 3*Hp) f32  per-chunk input gates
                      h_ref):      # VMEM scratch (Bb, Hp) f32       persists across chunks
    c = pl.program_id(1)
    nc = pl.num_programs(1)
    Bb, Hp = h_ref.shape
    Tc = gi_ref.shape[0] // Bb

    # ---- Phase 1: hoisted input projection for this chunk (one MXU matmul).
    # r/z hidden biases are pre-folded into b_gi, so the recurrence only
    # needs the n-gate hidden bias.
    gi_ref[...] = (
        jnp.dot(x_ref[...], w_ih_ref[...], preferred_element_type=jnp.float32)
        + b_gi_ref[...]
    )

    # Hidden state is (re)initialised at the first time chunk of every batch block.
    @pl.when(c == 0)
    def _():
        h_ref[...] = jnp.zeros_like(h_ref)

    # Loop-invariant values hoisted off the per-step serial chain.
    lengths = len_ref[...]                                  # (Bb, 1) int32
    b_hn = jnp.broadcast_to(b_hn_ref[...], (Bb, Hp))        # hoisted broadcast
    chunk_base = c * Tc
    steps = jnp.minimum(jnp.maximum(maxlen_ref[0] - chunk_base, 0), Tc)

    # ---- Phase 2: sequential recurrence, hidden state carried in vregs.
    def step(t, h):
        row0 = pl.multiple_of(t * Bb, Bb)
        gi_t = gi_ref[pl.ds(row0, Bb), :]                   # (Bb, 3*Hp)
        gh = jnp.dot(h, w_hh_ref[...], preferred_element_type=jnp.float32)
        # Fused r/z sigmoid over one contiguous (Bb, 2*Hp) slab.
        rz = jax.nn.sigmoid(gi_t[:, :2 * Hp] + gh[:, :2 * Hp])
        r = rz[:, :Hp]
        z = rz[:, Hp:]
        # PyTorch GRU: n = tanh(W_in x + b_in + r * (W_hn h + b_hn))
        n = jnp.tanh(gi_t[:, 2 * Hp:] + r * (gh[:, 2 * Hp:] + b_hn))
        h_new = n + z * (h - n)                             # == (1-z)*n + z*h
        # pack_padded_sequence semantics: frozen once t >= length.
        return jnp.where(lengths > chunk_base + t, h_new, h)

    h_final = jax.lax.fori_loop(0, steps, step, h_ref[...])
    h_ref[...] = h_final                                    # persist for next chunk

    # ---- Phase 3: bio_scoring linear, once per batch block (last chunk).
    @pl.when(c == nc - 1)
    def _():
        out_ref[...] = (
            jnp.dot(h_final, w_fc_ref[...], preferred_element_type=jnp.float32)
            + b_fc_ref[...]
        )


# ----------------------------------------------------------------------------
# Wrapper: embedding gather, single fused pad, weight/gate layout, pallas_call.
# ----------------------------------------------------------------------------
def bio_encoder_rnn_forward(bio_ids, bio_lengths, params, *,
                            time_chunk=None, batch_block=8,
                            input_matmul_dtype=jnp.bfloat16):
    """bio_ids: (B, T) int32, bio_lengths: (B,) int32 -> (B, F) float32."""
    emb = jnp.asarray(params["emb"], jnp.float32)     # (n_bios, D)
    w_ih = jnp.asarray(params["w_ih"], jnp.float32)   # (3H, D)
    w_hh = jnp.asarray(params["w_hh"], jnp.float32)   # (3H, H)
    b_ih = jnp.asarray(params["b_ih"], jnp.float32)   # (3H,)
    b_hh = jnp.asarray(params["b_hh"], jnp.float32)   # (3H,)
    w_fc = jnp.asarray(params["w_fc"], jnp.float32)   # (F, H)
    b_fc = jnp.asarray(params["b_fc"], jnp.float32)   # (F,)

    B, T = bio_ids.shape
    D = emb.shape[1]
    H = w_hh.shape[1]
    F = w_fc.shape[0]
    mm_dtype = input_matmul_dtype

    # Hardware-friendly padding: 8-sublane batch blocks, 128-lane D/H/F blocks.
    Bb = _round_up(max(batch_block, 8), 8)
    Dp = _round_up(max(D, 128), 128)
    Hp = _round_up(max(H, 128), 128)
    Fp = _round_up(max(F, 128), 128)

    nb = (max(B, 1) + Bb - 1) // Bb                   # batch blocks
    Bp = nb * Bb

    # Time-chunk size: keep per-chunk VMEM small (~2 MiB x chunk, double
    # buffered by Pallas, + ~4 MiB gi scratch) — safe on v7x's 64 MiB VMEM and
    # v5e's ~16 MiB scoped default; footprint is O(Tc), not O(T).
    x_bytes = jnp.dtype(mm_dtype).itemsize
    if time_chunk is None:
        tc_x = (2 << 20) // (Bb * Dp * x_bytes)
        tc_gi = (4 << 20) // (Bb * 3 * Hp * 4)
        time_chunk = int(max(1, min(tc_x, tc_gi, T)))
    Tc = int(min(max(int(time_chunk), 1), T))
    nc = (T + Tc - 1) // Tc                           # time chunks
    Tp = nc * Tc

    # ---- embedded inputs: single fused pad + chunk/block layout ----
    x = jnp.take(emb.astype(mm_dtype), bio_ids, axis=0)          # (B, T, D)
    x = jnp.transpose(x, (1, 0, 2))                               # (T, B, D)
    x = jnp.pad(x, ((0, Tp - T), (0, Bp - B), (0, Dp - D)))       # (Tp, Bp, Dp)
    x = x.reshape(nc, Tc, nb, Bb, Dp).transpose(2, 0, 1, 3, 4)    # (nb,nc,Tc,Bb,Dp)
    x_p = x.reshape(nb * nc * Tc * Bb, Dp)

    lengths = bio_lengths.astype(jnp.int32)
    len_col = jnp.pad(lengths, (0, Bp - B)).reshape(Bp, 1)
    max_len = jnp.max(lengths).astype(jnp.int32).reshape(1)       # SMEM prefetch scalar

    # ---- weights: per-gate Hp-wide lane blocks ----
    def pad_gates_t(w, rows, rows_p):
        # w: (3H, rows) -> (rows_p, 3*Hp); each gate in its own Hp-wide block.
        wt = w.T
        out = jnp.zeros((rows_p, 3 * Hp), jnp.float32)
        for g in range(3):
            out = out.at[:rows, g * Hp:g * Hp + H].set(wt[:, g * H:(g + 1) * H])
        return out

    def pad_gate_bias(b):
        out = jnp.zeros((1, 3 * Hp), jnp.float32)
        for g in range(3):
            out = out.at[0, g * Hp:g * Hp + H].set(b[g * H:(g + 1) * H])
        return out

    w_ih_p = pad_gates_t(w_ih, D, Dp).astype(mm_dtype)           # (Dp, 3*Hp)
    w_hh_p = pad_gates_t(w_hh, H, Hp)                            # (Hp, 3*Hp) f32
    # Fold r/z hidden biases into the input-projection bias; only the n-gate
    # hidden bias must stay separate (PyTorch applies r * (h@W_hn + b_hn)).
    b_gi = b_ih + jnp.concatenate([b_hh[:2 * H], jnp.zeros((H,), jnp.float32)])
    b_gi_p = pad_gate_bias(b_gi)                                 # (1, 3*Hp)
    b_hn_p = jnp.zeros((1, Hp), jnp.float32).at[0, :H].set(b_hh[2 * H:])
    w_fc_p = jnp.zeros((Hp, Fp), jnp.float32).at[:H, :F].set(w_fc.T)
    b_fc_p = jnp.zeros((1, Fp), jnp.float32).at[0, :F].set(b_fc)

    grid_spec = pltpu.PrefetchScalarGridSpec(
        num_scalar_prefetch=1,                     # max_len -> SMEM loop clamp
        grid=(nb, nc),                             # (batch blocks, time chunks)
        in_specs=[
            pl.BlockSpec((Tc * Bb, Dp), lambda b, c, ml: (b * nc + c, 0)),  # x chunk
            pl.BlockSpec((Bb, 1), lambda b, c, ml: (b, 0)),                 # lengths
            pl.BlockSpec((Dp, 3 * Hp), lambda b, c, ml: (0, 0)),            # W_ih^T
            pl.BlockSpec((Hp, 3 * Hp), lambda b, c, ml: (0, 0)),            # W_hh^T
            pl.BlockSpec((1, 3 * Hp), lambda b, c, ml: (0, 0)),             # b_gi
            pl.BlockSpec((1, Hp), lambda b, c, ml: (0, 0)),                 # b_hn
            pl.BlockSpec((Hp, Fp), lambda b, c, ml: (0, 0)),                # W_fc^T
            pl.BlockSpec((1, Fp), lambda b, c, ml: (0, 0)),                 # b_fc
        ],
        out_specs=pl.BlockSpec((Bb, Fp), lambda b, c, ml: (b, 0)),
        scratch_shapes=[
            pltpu.VMEM((Tc * Bb, 3 * Hp), jnp.float32),   # per-chunk input gates
            pltpu.VMEM((Bb, Hp), jnp.float32),            # carried hidden state
        ],
    )

    out_p = pl.pallas_call(
        _gru_chunk_kernel,
        out_shape=jax.ShapeDtypeStruct((Bp, Fp), jnp.float32),
        grid_spec=grid_spec,
        compiler_params=pltpu.CompilerParams(
            # Batch blocks are independent (v7x megacore-shardable); the time
            # axis carries the recurrence and must stay sequential.
            dimension_semantics=("parallel", "arbitrary"),
            vmem_limit_bytes=32 * 1024 * 1024,
        ),
    )(max_len, x_p, len_col, w_ih_p, w_hh_p, b_gi_p, b_hn_p, w_fc_p, b_fc_p)

    return out_p[:B, :F]


# ----------------------------------------------------------------------------
# Pure-JAX reference (mirrors torch GRU + pack_padded semantics).
# ----------------------------------------------------------------------------
def bio_encoder_rnn_reference(bio_ids, bio_lengths, params):
    emb = jnp.asarray(params["emb"], jnp.float32)
    w_ih = jnp.asarray(params["w_ih"], jnp.float32)
    w_hh = jnp.asarray(params["w_hh"], jnp.float32)
    b_ih = jnp.asarray(params["b_ih"], jnp.float32)
    b_hh = jnp.asarray(params["b_hh"], jnp.float32)
    w_fc = jnp.asarray(params["w_fc"], jnp.float32)
    b_fc = jnp.asarray(params["b_fc"], jnp.float32)

    B, T = bio_ids.shape
    H = w_hh.shape[1]
    x = jnp.take(emb, bio_ids, axis=0).astype(jnp.float32)  # (B, T, D)

    def step(h, inp):
        x_t, t = inp
        gi = x_t @ w_ih.T + b_ih
        gh = h @ w_hh.T + b_hh
        i_r, i_z, i_n = jnp.split(gi, 3, axis=-1)
        h_r, h_z, h_n = jnp.split(gh, 3, axis=-1)
        r = jax.nn.sigmoid(i_r + h_r)
        z = jax.nn.sigmoid(i_z + h_z)
        n = jnp.tanh(i_n + r * h_n)
        h_new = (1.0 - z) * n + z * h
        valid = (bio_lengths > t)[:, None]
        return jnp.where(valid, h_new, h), None

    h0 = jnp.zeros((B, H), jnp.float32)
    h_final, _ = jax.lax.scan(step, h0, (jnp.transpose(x, (1, 0, 2)), jnp.arange(T)))
    return h_final @ w_fc.T + b_fc


# ----------------------------------------------------------------------------
if __name__ == "__main__":
    # Small config consistent with the module's d_args.
    n_bios, bio_dim, bio_rnn, nb_fc_node = 10, 16, 32, 24
    B, T = 10, 8   # B=10 -> two 8-row batch blocks, exercising the parallel axis

    key = jax.random.PRNGKey(0)
    ks = jax.random.split(key, 8)

    params = {
        "emb":  jax.random.normal(ks[0], (n_bios, bio_dim), jnp.float32) * 0.5,
        "w_ih": jax.random.normal(ks[1], (3 * bio_rnn, bio_dim), jnp.float32) * 0.2,
        "w_hh": jax.random.normal(ks[2], (3 * bio_rnn, bio_rnn), jnp.float32) * 0.2,
        "b_ih": jax.random.normal(ks[3], (3 * bio_rnn,), jnp.float32) * 0.1,
        "b_hh": jax.random.normal(ks[4], (3 * bio_rnn,), jnp.float32) * 0.1,
        "w_fc": jax.random.normal(ks[5], (nb_fc_node, bio_rnn), jnp.float32) * 0.2,
        "b_fc": jax.random.normal(ks[6], (nb_fc_node,), jnp.float32) * 0.1,
    }

    bio_ids = jax.random.randint(ks[7], (B, T), 0, n_bios, dtype=jnp.int32)
    # pack_padded_sequence (enforce_sorted=True) implies descending lengths.
    bio_lengths = jnp.array([8, 8, 7, 6, 5, 4, 3, 2, 2, 1], dtype=jnp.int32)

    ref = jax.block_until_ready(bio_encoder_rnn_reference(bio_ids, bio_lengths, params))

    # Strict check: f32 MXU operands; time_chunk=3 forces 3 chunks (T_pad=9),
    # exercising chunked pipelining, time padding and the batch-block axis.
    out_f32 = jax.block_until_ready(
        bio_encoder_rnn_forward(bio_ids, bio_lengths, params,
                                time_chunk=3, input_matmul_dtype=jnp.float32))
    assert out_f32.shape == (B, nb_fc_node), out_f32.shape
    assert jnp.allclose(out_f32, ref, atol=1e-3, rtol=1e-3), (out_f32, ref)

    # Default perf path: bf16 operands for the input projection (f32 accumulate)
    # -> looser tolerance against the f32 reference.
    out_bf16 = jax.block_until_ready(
        bio_encoder_rnn_forward(bio_ids, bio_lengths, params, time_chunk=3))
    assert out_bf16.shape == (B, nb_fc_node), out_bf16.shape
    assert jnp.allclose(out_bf16, ref, atol=5e-2, rtol=5e-2), (out_bf16, ref)

    print("KERNEL_OK")
</pallas_src>

<mosaic_0001>
module attributes {stable_mosaic.version = 11 : i64} {
  func.func @_gru_chunk_kernel(%arg0: i32, %arg1: i32, %arg2: memref<1xi32, #tpu.memory_space<smem>>, %arg3: memref<24x128xf32, #tpu.memory_space<vmem>>, %arg4: memref<8x1xi32, #tpu.memory_space<vmem>>, %arg5: memref<128x384xf32, #tpu.memory_space<vmem>>, %arg6: memref<128x384xf32, #tpu.memory_space<vmem>>, %arg7: memref<1x384xf32, #tpu.memory_space<vmem>>, %arg8: memref<1x128xf32, #tpu.memory_space<vmem>>, %arg9: memref<128x128xf32, #tpu.memory_space<vmem>>, %arg10: memref<1x128xf32, #tpu.memory_space<vmem>>, %arg11: memref<8x128xf32, #tpu.memory_space<vmem>>, %arg12: memref<24x384xf32, #tpu.memory_space<vmem>>, %arg13: memref<8x128xf32, #tpu.memory_space<vmem>>) attributes {dimension_semantics = [#tpu.dimension_semantics<parallel>, #tpu.dimension_semantics<arbitrary>], iteration_bounds = array<i64: 2, 3>, scalar_prefetch = 1 : i64, scratch_operands = 2 : i64, tpu.core_type = #tpu.core_type<tc>, window_params = [{transform_indices = @transform_0, window_bounds = array<i64: 24, 128>}, {transform_indices = @transform_1, window_bounds = array<i64: 8, 1>}, {pipeline_mode = #tpu.pipeline_mode<synchronous>, transform_indices = @transform_2, window_bounds = array<i64: 128, 384>}, {pipeline_mode = #tpu.pipeline_mode<synchronous>, transform_indices = @transform_3, window_bounds = array<i64: 128, 384>}, {pipeline_mode = #tpu.pipeline_mode<synchronous>, transform_indices = @transform_4, window_bounds = array<i64: 1, 384>}, {pipeline_mode = #tpu.pipeline_mode<synchronous>, transform_indices = @transform_5, window_bounds = array<i64: 1, 128>}, {pipeline_mode = #tpu.pipeline_mode<synchronous>, transform_indices = @transform_6, window_bounds = array<i64: 128, 128>}, {pipeline_mode = #tpu.pipeline_mode<synchronous>, transform_indices = @transform_7, window_bounds = array<i64: 1, 128>}, {transform_indices = @transform_8, window_bounds = array<i64: 8, 128>}]} {
    %c0 = arith.constant 0 : index
    %c0_0 = arith.constant 0 : index
    %0 = vector.load %arg3[%c0, %c0_0] : memref<24x128xf32, #tpu.memory_space<vmem>>, vector<24x128xf32>
    %c0_1 = arith.constant 0 : index
    %c0_2 = arith.constant 0 : index
    %1 = vector.load %arg5[%c0_1, %c0_2] : memref<128x384xf32, #tpu.memory_space<vmem>>, vector<128x384xf32>
    %cst = arith.constant dense<0.000000e+00> : vector<24x384xf32>
    %2 = tpu.matmul %0, %1, %cst {dimension_numbers = #tpu.dot_dimension_numbers<[1], [0], [0], [1], [0, 0, 1, 1], [], []>} : vector<24x128xf32>, vector<128x384xf32>, vector<24x384xf32> -> vector<24x384xf32>
    %c0_3 = arith.constant 0 : index
    %c0_4 = arith.constant 0 : index
    %3 = vector.load %arg7[%c0_3, %c0_4] : memref<1x384xf32, #tpu.memory_space<vmem>>, vector<1x384xf32>
    %4 = vector.broadcast %3 : vector<1x384xf32> to vector<24x384xf32>
    %5 = arith.addf %2, %4 : vector<24x384xf32>
    %c0_5 = arith.constant 0 : index
    %c0_6 = arith.constant 0 : index
    %6 = vector.load %arg12[%c0_5, %c0_6] : memref<24x384xf32, #tpu.memory_space<vmem>>, vector<24x384xf32>
    tpu.vector_store %arg12[%c0_5, %c0_6], %5 {strides = array<i32>} : memref<24x384xf32, #tpu.memory_space<vmem>>, vector<24x384xf32>,
    %c0_i32 = arith.constant 0 : i32
    %7 = arith.cmpi eq, %arg1, %c0_i32 : i32
    %8 = arith.extui %7 : i1 to i32
    %c0_i32_7 = arith.constant 0 : i32
    %9 = arith.cmpi ne, %8, %c0_i32_7 : i32
    scf.if %9 {
      %cst_21 = arith.constant 0.000000e+00 : f32
      %27 = vector.broadcast %cst_21 : f32 to vector<8x128xf32>
      %c0_22 = arith.constant 0 : index
      %c0_23 = arith.constant 0 : index
      %28 = vector.load %arg13[%c0_22, %c0_23] : memref<8x128xf32, #tpu.memory_space<vmem>>, vector<8x128xf32>
      tpu.vector_store %arg13[%c0_22, %c0_23], %27 {strides = array<i32>} : memref<8x128xf32, #tpu.memory_space<vmem>>, vector<8x128xf32>,
    } else {
    }
    %c0_8 = arith.constant 0 : index
    %c0_9 = arith.constant 0 : index
    %10 = vector.load %arg4[%c0_8, %c0_9] : memref<8x1xi32, #tpu.memory_space<vmem>>, vector<8x1xi32>
    %c0_10 = arith.constant 0 : index
    %c0_11 = arith.constant 0 : index
    %11 = vector.load %arg8[%c0_10, %c0_11] : memref<1x128xf32, #tpu.memory_space<vmem>>, vector<1x128xf32>
    %12 = vector.shape_cast %11 : vector<1x128xf32> to vector<1x128xf32>
    %13 = vector.broadcast %12 : vector<1x128xf32> to vector<8x128xf32>
    %c3_i32 = arith.constant 3 : i32
    %14 = arith.muli %arg1, %c3_i32 : i32
    %c0_12 = arith.constant 0 : index
    %15 = memref.load %arg2[%c0_12] : memref<1xi32, #tpu.memory_space<smem>>
    %16 = arith.subi %15, %14 : i32
    %c0_i32_13 = arith.constant 0 : i32
    %17 = arith.maxsi %16, %c0_i32_13 : i32
    %c3_i32_14 = arith.constant 3 : i32
    %18 = arith.minsi %17, %c3_i32_14 : i32
    %c0_15 = arith.constant 0 : index
    %c0_16 = arith.constant 0 : index
    %19 = vector.load %arg13[%c0_15, %c0_16] : memref<8x128xf32, #tpu.memory_space<vmem>>, vector<8x128xf32>
    %c0_i32_17 = arith.constant 0 : i32
    %20 = arith.subi %18, %c0_i32_17 : i32
    %21 = arith.addi %c0_i32_17, %20 : i32
    %c1_i32 = arith.constant 1 : i32
    %22 = scf.for %arg14 = %c0_i32_17 to %21 step %c1_i32 iter_args(%arg15 = %19) -> (vector<8x128xf32>)  : i32 {
      %c8_i32 = arith.constant 8 : i32
      %27 = arith.muli %arg14, %c8_i32 : i32
      %28 = tpu.assume_multiple %27, 8 : i32
      %29 = arith.index_cast %28 : i32 to index
      %c0_21 = arith.constant 0 : index
      %30 = vector.load %arg12[%29, %c0_21] : memref<24x384xf32, #tpu.memory_space<vmem>>, vector<8x384xf32>
      %c0_22 = arith.constant 0 : index
      %c0_23 = arith.constant 0 : index
      %31 = vector.load %arg6[%c0_22, %c0_23] : memref<128x384xf32, #tpu.memory_space<vmem>>, vector<128x384xf32>
      %cst_24 = arith.constant dense<0.000000e+00> : vector<8x384xf32>
      %32 = tpu.matmul %arg15, %31, %cst_24 {dimension_numbers = #tpu.dot_dimension_numbers<[1], [0], [0], [1], [0, 0, 1, 1], [], []>} : vector<8x128xf32>, vector<128x384xf32>, vector<8x384xf32> -> vector<8x384xf32>
      %33 = vector.extract_strided_slice %30 {offsets = [0, 0], sizes = [8, 256], strides = [1, 1]} : vector<8x384xf32> to vector<8x256xf32>
      %34 = vector.extract_strided_slice %32 {offsets = [0, 0], sizes = [8, 256], strides = [1, 1]} : vector<8x384xf32> to vector<8x256xf32>
      %35 = arith.addf %33, %34 : vector<8x256xf32>
      %36 = arith.negf %35 : vector<8x256xf32>
      %37 = math.exp %36 : vector<8x256xf32>
      %cst_25 = arith.constant 1.000000e+00 : f32
      %38 = vector.broadcast %cst_25 : f32 to vector<8x256xf32>
      %39 = arith.addf %38, %37 : vector<8x256xf32>
      %40 = arith.divf %38, %39 : vector<8x256xf32>
      %41 = vector.extract_strided_slice %40 {offsets = [0, 0], sizes = [8, 128], strides = [1, 1]} : vector<8x256xf32> to vector<8x128xf32>
      %42 = vector.extract_strided_slice %40 {offsets = [0, 128], sizes = [8, 128], strides = [1, 1]} : vector<8x256xf32> to vector<8x128xf32>
      %43 = vector.extract_strided_slice %30 {offsets = [0, 256], sizes = [8, 128], strides = [1, 1]} : vector<8x384xf32> to vector<8x128xf32>
      %44 = vector.extract_strided_slice %32 {offsets = [0, 256], sizes = [8, 128], strides = [1, 1]} : vector<8x384xf32> to vector<8x128xf32>
      %45 = arith.addf %44, %13 : vector<8x128xf32>
      %46 = arith.mulf %41, %45 : vector<8x128xf32>
      %47 = arith.addf %43, %46 : vector<8x128xf32>
      %48 = math.tanh %47 : vector<8x128xf32>
      %49 = arith.subf %arg15, %48 : vector<8x128xf32>
      %50 = arith.mulf %42, %49 : vector<8x128xf32>
      %51 = arith.addf %48, %50 : vector<8x128xf32>
      %52 = arith.addi %14, %arg14 : i32
      %53 = vector.broadcast %52 : i32 to vector<8x1xi32>
      %54 = arith.cmpi sgt, %10, %53 : vector<8x1xi32>
      %55 = vector.shape_cast %54 : vector<8x1xi1> to vector<8x1xi1>
      %56 = vector.broadcast %55 : vector<8x1xi1> to vector<8x128xi1>
      %57 = arith.select %56, %51, %arg15 : vector<8x128xi1>, vector<8x128xf32>
      scf.yield %57 : vector<8x128xf32>
    }
    %c0_18 = arith.constant 0 : index
    %c0_19 = arith.constant 0 : index
    %23 = vector.load %arg13[%c0_18, %c0_19] : memref<8x128xf32, #tpu.memory_space<vmem>>, vector<8x128xf32>
    tpu.vector_store %arg13[%c0_18, %c0_19], %22 {strides = array<i32>} : memref<8x128xf32, #tpu.memory_space<vmem>>, vector<8x128xf32>,
    %c2_i32 = arith.constant 2 : i32
    %24 = arith.cmpi eq, %arg1, %c2_i32 : i32
    %25 = arith.extui %24 : i1 to i32
    %c0_i32_20 = arith.constant 0 : i32
    %26 = arith.cmpi ne, %25, %c0_i32_20 : i32
    scf.if %26 {
      %c0_21 = arith.constant 0 : index
      %c0_22 = arith.constant 0 : index
      %27 = vector.load %arg9[%c0_21, %c0_22] : memref<128x128xf32, #tpu.memory_space<vmem>>, vector<128x128xf32>
      %cst_23 = arith.constant dense<0.000000e+00> : vector<8x128xf32>
      %28 = tpu.matmul %22, %27, %cst_23 {dimension_numbers = #tpu.dot_dimension_numbers<[1], [0], [0], [1], [0, 0, 1, 1], [], []>} : vector<8x128xf32>, vector<128x128xf32>, vector<8x128xf32> -> vector<8x128xf32>
      %c0_24 = arith.constant 0 : index
      %c0_25 = arith.constant 0 : index
      %29 = vector.load %arg10[%c0_24, %c0_25] : memref<1x128xf32, #tpu.memory_space<vmem>>, vector<1x128xf32>
      %30 = vector.broadcast %29 : vector<1x128xf32> to vector<8x128xf32>
      %31 = arith.addf %28, %30 : vector<8x128xf32>
      %c0_26 = arith.constant 0 : index
      %c0_27 = arith.constant 0 : index
      %32 = vector.load %arg11[%c0_26, %c0_27] : memref<8x128xf32, #tpu.memory_space<vmem>>, vector<8x128xf32>
      tpu.vector_store %arg11[%c0_26, %c0_27], %31 {strides = array<i32>} : memref<8x128xf32, #tpu.memory_space<vmem>>, vector<8x128xf32>,
    } else {
    }
    return
  }
  func.func @transform_0(%arg0: i32, %arg1: i32, %arg2: memref<1xi32, #tpu.memory_space<smem>>) -> (i32, i32) {
    %c3_i32 = arith.constant 3 : i32
    %0 = arith.muli %arg0, %c3_i32 : i32
    %1 = arith.addi %0, %arg1 : i32
    %c0_i32 = arith.constant 0 : i32
    %c0_i32_0 = arith.constant 0 : i32
    return %1, %c0_i32 : i32, i32
  }
  func.func @transform_1(%arg0: i32, %arg1: i32, %arg2: memref<1xi32, #tpu.memory_space<smem>>) -> (i32, i32) {
    %c0_i32 = arith.constant 0 : i32
    %c0_i32_0 = arith.constant 0 : i32
    return %arg0, %c0_i32 : i32, i32
  }
  func.func @transform_2(%arg0: i32, %arg1: i32, %arg2: memref<1xi32, #tpu.memory_space<smem>>) -> (i32, i32) {
    %c0_i32 = arith.constant 0 : i32
    %c0_i32_0 = arith.constant 0 : i32
    %c0_i32_1 = arith.constant 0 : i32
    return %c0_i32, %c0_i32_0 : i32, i32
  }
  func.func @transform_3(%arg0: i32, %arg1: i32, %arg2: memref<1xi32, #tpu.memory_space<smem>>) -> (i32, i32) {
    %c0_i32 = arith.constant 0 : i32
    %c0_i32_0 = arith.constant 0 : i32
    %c0_i32_1 = arith.constant 0 : i32
    return %c0_i32, %c0_i32_0 : i32, i32
  }
  func.func @transform_4(%arg0: i32, %arg1: i32, %arg2: memref<1xi32, #tpu.memory_space<smem>>) -> (i32, i32) {
    %c0_i32 = arith.constant 0 : i32
    %c0_i32_0 = arith.constant 0 : i32
    %c0_i32_1 = arith.constant 0 : i32
    return %c0_i32, %c0_i32_0 : i32, i32
  }
  func.func @transform_5(%arg0: i32, %arg1: i32, %arg2: memref<1xi32, #tpu.memory_space<smem>>) -> (i32, i32) {
    %c0_i32 = arith.constant 0 : i32
    %c0_i32_0 = arith.constant 0 : i32
    %c0_i32_1 = arith.constant 0 : i32
    return %c0_i32, %c0_i32_0 : i32, i32
  }
  func.func @transform_6(%arg0: i32, %arg1: i32, %arg2: memref<1xi32, #tpu.memory_space<smem>>) -> (i32, i32) {
    %c0_i32 = arith.constant 0 : i32
    %c0_i32_0 = arith.constant 0 : i32
    %c0_i32_1 = arith.constant 0 : i32
    return %c0_i32, %c0_i32_0 : i32, i32
  }
  func.func @transform_7(%arg0: i32, %arg1: i32, %arg2: memref<1xi32, #tpu.memory_space<smem>>) -> (i32, i32) {
    %c0_i32 = arith.constant 0 : i32
    %c0_i32_0 = arith.constant 0 : i32
    %c0_i32_1 = arith.constant 0 : i32
    return %c0_i32, %c0_i32_0 : i32, i32
  }
  func.func @transform_8(%arg0: i32, %arg1: i32, %arg2: memref<1xi32, #tpu.memory_space<smem>>) -> (i32, i32) {
    %c0_i32 = arith.constant 0 : i32
    %c0_i32_0 = arith.constant 0 : i32
    return %arg0, %c0_i32 : i32, i32
  }
}

</mosaic_0001>

<llo_original>
// kernel: tpu_custom_call.1
$region0: #{tpu_custom_call.1}
  #allocation0 [shape = 'u32[]', space=smem, size = 0x4, offset = 0x4, fixed_abs, tag = 'smem constant byte address 0x4 - core index']
  #allocation1 [shape = 'u32[144,128]{1,0:T(1,128)}', space=vmem, size = 0x12000, scoped, tag = 'internal scratch']
  #allocation2 [shape = 'f32[24,384]{1,0:T(8,128)}', space=vmem, size = 0x9000, scoped, tag = 'scratch operand']
  #allocation3 [shape = 'f32[8,128]{1,0:T(8,128)}', space=vmem, size = 0x1000, scoped, tag = 'scratch operand']
  #allocation4 [shape = 's32[1]{0}', space=sflag, size = 0x4, scoped, tag = 'scoped memory for tpu_custom_call.1']
  #allocation5 [shape = 's32[1]{0:T(128)S(6)}', space=smem, size = 0x200, scoped, tag = 'prefetched SMEM operand 0']
  %s0 = inlined_call_operand.<no memory space> [shape: s32[1], index: 0, kind: input, shape index: {}]
  %s1 = inlined_call_operand.hbm [shape: f32[144,128], index: 1, kind: input, shape index: {}]
  %s2 = inlined_call_operand.vmem [shape: s32[16,1], index: 2, kind: input, shape index: {}]
  %s3 = inlined_call_operand.hbm [shape: f32[128,384], index: 3, kind: input, shape index: {}]
  %s4 = inlined_call_operand.hbm [shape: f32[128,384], index: 4, kind: input, shape index: {}]
  %s5 = inlined_call_operand.vmem [shape: f32[1,384], index: 5, kind: input, shape index: {}]
  %s6 = inlined_call_operand.vmem [shape: f32[1,128], index: 6, kind: input, shape index: {}]
  %s7 = inlined_call_operand.hbm [shape: f32[128,128], index: 7, kind: input, shape index: {}]
  %s8 = inlined_call_operand.vmem [shape: f32[1,128], index: 8, kind: input, shape index: {}]
  %s9 = inlined_call_operand.hbm [shape: f32[16,128], index: 9, kind: output, shape index: {}]
  %s10 = sld [smem:[#allocation0]]
  $region96: #{tpu_custom_call.1} parent=0
    _
  %s12 = ssub.s32 1, %s10
  %s13 = scalar_select 0, %s12, %s10
  %14 = sst [smem:[#allocation5]] %s0
  $region1: #{tpu_custom_call.1} parent=0
    #allocation6 [shape = 'u8[24576]{0}', space=vmem, size = 0x6000, scoped, tag = 'input window, operand 1']
    #allocation7 [shape = 's32[2]{0}', space=sflag, size = 0x8, scoped, tag = 'scoped memory for tpu_custom_call.1']
    #allocation8 [shape = 's32[2]{0}', space=sflag, size = 0x8, scoped, tag = 'scoped memory for tpu_custom_call.1']
    #allocation9 [shape = 'u8[196608]{0}', space=vmem, size = 0x30000, scoped, tag = 'input window, operand 3, single buffered']
    #allocation10 [shape = 's32[1]{0}', space=sflag, size = 0x4, scoped, tag = 'scoped memory for tpu_custom_call.1']
    #allocation11 [shape = 'u8[196608]{0}', space=vmem, size = 0x30000, scoped, tag = 'input window, operand 4, single buffered']
    #allocation12 [shape = 'u8[65536]{0}', space=vmem, size = 0x10000, scoped, tag = 'input window, operand 7, single buffered']
    #allocation13 [shape = 's32[1]{0}', space=sflag, size = 0x4, scoped, tag = 'scoped memory for tpu_custom_call.1']
    #allocation14 [shape = 'u8[8192]{0}', space=vmem, size = 0x2000, scoped, tag = 'output window, operand 0']
    %15 = vsyncpa [#allocation7], 0
    %s16 = scalar_lea.sflag [#allocation7], 1
    %17 = vsyncpa %s16, 0
    %18 = vsyncpa [#allocation10], 0
    %19 = vsyncpa [#allocation13], 0
    %20 = vsyncpa [#allocation8], 0
    %s21 = scalar_lea.sflag [#allocation8], 1
    %22 = vsyncpa %s21, 0
    loop: start=0, step=1, limit=8
    $region2: #{tpu_custom_call.1} parent=1 // loop_pre_header
      _
    $region3: #{tpu_custom_call.1} parent=1 // loop_header
      %s24 = sphi 0, %s28
      %p25 = scmp.ge.s32.totalorder %s24, 8
      %s31 = sphi 0, %s43
      %s32 = sphi 0, %s39
      %s33 = sphi 0, %s31
      %s34 = sphi 0, %s32
      %s35 = sphi 0, %s33
      %s36 = sphi 0, %s34
      %s50 = sphi 0, %s52
      %s53 = sphi 0, %s50
      %s54 = sphi 0, %s53
      %s70 = sphi 0, %s54
      %s76 = sphi 0, %s78
      %s79 = sphi 0, %s76
      %s80 = sphi 0, %s79
      %s96 = sphi 0, %s80
      %s100 = sphi 0, %s100
      %s102 = sphi 0, %s100
      %s103 = sphi 0, %s102
      %s117 = sphi 0, %s103
      %s121 = sphi 0, %s121
      %s123 = sphi 0, %s121
      %s124 = sphi 0, %s123
      %s138 = sphi 0, %s124
      %s142 = sphi 0, %s142
      %s144 = sphi 0, %s142
      %s145 = sphi 0, %s144
      %s159 = sphi 0, %s145
      %s163 = sphi 0, %s163
      %s165 = sphi 0, %s163
      %s166 = sphi 0, %s165
      %s180 = sphi 0, %s166
      %s184 = sphi 0, %s184
      %s186 = sphi 0, %s184
      %s187 = sphi 0, %s186
      %s201 = sphi 0, %s187
      %s205 = sphi 0, %s205
      %s207 = sphi 0, %s205
      %s208 = sphi 0, %s207
      %s222 = sphi 0, %s208
      %s228 = sphi 0, %s230
      %s231 = sphi 0, %s228
      %s232 = sphi 0, %s231
      %s248 = sphi 0, %s232
    $region4: #{tpu_custom_call.1} parent=1 // loop_header_branch
      %27 = sbr.rel (%p25) target = $region8
    $region5: #{tpu_custom_call.1} parent=1 // loop_body
      %s29 = ssub.s32 %s24, 1
      %s30 = ssub.s32 %s24, 2
      %s37 = sadd.s32 1, %s32
      %p38 = scmp.ge.s32.totalorder %s37, 3
      %s39 = scalar_select %p38, 0, %s37
      %s40 = sadd.s32 1, %s31
      %s41 = scalar_select %p38, %s40, %s31
      %p42 = scmp.ge.s32.totalorder %s41, 2
      %s43 = scalar_select %p42, 0, %s41
      %s44 = smul.u32 %s31, 3
      %s45 = sadd.s32 %s44, %s32
      %s46 = smul.u32 %s43, 3
      %s47 = sadd.s32 %s46, %s39
      %s48 = ssub.s32 %s45, %s47
      %p49 = scmp.eq.s32.totalorder %s48, 0
      %s51 = sadd.s32 %s50, 1
      %s52 = scalar_select %p49, %s50, %s51
      %p55 = pneg %p49
      %p56 = scmp.eq.s32.totalorder %s24, 5
      %p57 = por %p55, %p56
      %p58 = scmp.ne.s32.totalorder %s50, %s53
      %p59 = scmp.eq.s32.totalorder %s24, 0
      %p60 = por %p58, %p59
      %p61 = scmp.ne.s32.totalorder %s50, %s53
      %p62 = scmp.eq.s32.totalorder %s29, 5
      %p63 = por %p61, %p62
      %p64 = scmp.ne.s32.totalorder %s53, %s54
      %p65 = scmp.eq.s32.totalorder %s29, 0
      %p66 = por %p64, %p65
      %p67 = scmp.ne.s32.totalorder %s53, %s54
      %p68 = scmp.eq.s32.totalorder %s30, 5
      %p69 = por %p67, %p68
      %p71 = scmp.ne.s32.totalorder %s54, %s70
      %p72 = scmp.eq.s32.totalorder %s30, 0
      %p73 = por %p71, %p72
      %s74 = ssub.s32 %s31, %s43
      %p75 = scmp.eq.s32.totalorder %s74, 0
      %s77 = sadd.s32 %s76, 1
      %s78 = scalar_select %p75, %s76, %s77
      %p81 = pneg %p75
      %p82 = scmp.eq.s32.totalorder %s24, 5
      %p83 = por %p81, %p82
      %p84 = scmp.ne.s32.totalorder %s76, %s79
      %p85 = scmp.eq.s32.totalorder %s24, 0
      %p86 = por %p84, %p85
      %p87 = scmp.ne.s32.totalorder %s76, %s79
      %p88 = scmp.eq.s32.totalorder %s29, 5
      %p89 = por %p87, %p88
      %p90 = scmp.ne.s32.totalorder %s79, %s80
      %p91 = scmp.eq.s32.totalorder %s29, 0
      %p92 = por %p90, %p91
      %p93 = scmp.ne.s32.totalorder %s79, %s80
      %p94 = scmp.eq.s32.totalorder %s30, 5
      %p95 = por %p93, %p94
      %p97 = scmp.ne.s32.totalorder %s80, %s96
      %p98 = scmp.eq.s32.totalorder %s30, 0
      %p99 = por %p97, %p98
      %s101 = sadd.s32 %s100, 1
      %p104 = scmp.eq.s32.totalorder %s24, 5
      %p105 = scmp.ne.s32.totalorder %s100, %s102
      %p106 = scmp.eq.s32.totalorder %s24, 0
      %p107 = por %p105, %p106
      %p108 = scmp.ne.s32.totalorder %s100, %s102
      %p109 = scmp.eq.s32.totalorder %s29, 5
      %p110 = por %p108, %p109
      %p111 = scmp.ne.s32.totalorder %s102, %s103
      %p112 = scmp.eq.s32.totalorder %s29, 0
      %p113 = por %p111, %p112
      %p114 = scmp.ne.s32.totalorder %s102, %s103
      %p115 = scmp.eq.s32.totalorder %s30, 5
      %p116 = por %p114, %p115
      %p118 = scmp.ne.s32.totalorder %s103, %s117
      %p119 = scmp.eq.s32.totalorder %s30, 0
      %p120 = por %p118, %p119
      %s122 = sadd.s32 %s121, 1
      %p125 = scmp.eq.s32.totalorder %s24, 5
      %p126 = scmp.ne.s32.totalorder %s121, %s123
      %p127 = scmp.eq.s32.totalorder %s24, 0
      %p128 = por %p126, %p127
      %p129 = scmp.ne.s32.totalorder %s121, %s123
      %p130 = scmp.eq.s32.totalorder %s29, 5
      %p131 = por %p129, %p130
      %p132 = scmp.ne.s32.totalorder %s123, %s124
      %p133 = scmp.eq.s32.totalorder %s29, 0
      %p134 = por %p132, %p133
      %p135 = scmp.ne.s32.totalorder %s123, %s124
      %p136 = scmp.eq.s32.totalorder %s30, 5
      %p137 = por %p135, %p136
      %p139 = scmp.ne.s32.totalorder %s124, %s138
      %p140 = scmp.eq.s32.totalorder %s30, 0
      %p141 = por %p139, %p140
      %s143 = sadd.s32 %s142, 1
      %p146 = scmp.eq.s32.totalorder %s24, 5
      %p147 = scmp.ne.s32.totalorder %s142, %s144
      %p148 = scmp.eq.s32.totalorder %s24, 0
      %p149 = por %p147, %p148
      %p150 = scmp.ne.s32.totalorder %s142, %s144
      %p151 = scmp.eq.s32.totalorder %s29, 5
      %p152 = por %p150, %p151
      %p153 = scmp.ne.s32.totalorder %s144, %s145
      %p154 = scmp.eq.s32.totalorder %s29, 0
      %p155 = por %p153, %p154
      %p156 = scmp.ne.s32.totalorder %s144, %s145
      %p157 = scmp.eq.s32.totalorder %s30, 5
      %p158 = por %p156, %p157
      %p160 = scmp.ne.s32.totalorder %s145, %s159
      %p161 = scmp.eq.s32.totalorder %s30, 0
      %p162 = por %p160, %p161
      %s164 = sadd.s32 %s163, 1
      %p167 = scmp.eq.s32.totalorder %s24, 5
      %p168 = scmp.ne.s32.totalorder %s163, %s165
      %p169 = scmp.eq.s32.totalorder %s24, 0
      %p170 = por %p168, %p169
      %p171 = scmp.ne.s32.totalorder %s163, %s165
      %p172 = scmp.eq.s32.totalorder %s29, 5
      %p173 = por %p171, %p172
      %p174 = scmp.ne.s32.totalorder %s165, %s166
      %p175 = scmp.eq.s32.totalorder %s29, 0
      %p176 = por %p174, %p175
      %p177 = scmp.ne.s32.totalorder %s165, %s166
      %p178 = scmp.eq.s32.totalorder %s30, 5
      %p179 = por %p177, %p178
      %p181 = scmp.ne.s32.totalorder %s166, %s180
      %p182 = scmp.eq.s32.totalorder %s30, 0
      %p183 = por %p181, %p182
      %s185 = sadd.s32 %s184, 1
      %p188 = scmp.eq.s32.totalorder %s24, 5
      %p189 = scmp.ne.s32.totalorder %s184, %s186
      %p190 = scmp.eq.s32.totalorder %s24, 0
      %p191 = por %p189, %p190
      %p192 = scmp.ne.s32.totalorder %s184, %s186
      %p193 = scmp.eq.s32.totalorder %s29, 5
      %p194 = por %p192, %p193
      %p195 = scmp.ne.s32.totalorder %s186, %s187
      %p196 = scmp.eq.s32.totalorder %s29, 0
      %p197 = por %p195, %p196
      %p198 = scmp.ne.s32.totalorder %s186, %s187
      %p199 = scmp.eq.s32.totalorder %s30, 5
      %p200 = por %p198, %p199
      %p202 = scmp.ne.s32.totalorder %s187, %s201
      %p203 = scmp.eq.s32.totalorder %s30, 0
      %p204 = por %p202, %p203
      %s206 = sadd.s32 %s205, 1
      %p209 = scmp.eq.s32.totalorder %s24, 5
      %p210 = scmp.ne.s32.totalorder %s205, %s207
      %p211 = scmp.eq.s32.totalorder %s24, 0
      %p212 = por %p210, %p211
      %p213 = scmp.ne.s32.totalorder %s205, %s207
      %p214 = scmp.eq.s32.totalorder %s29, 5
      %p215 = por %p213, %p214
      %p216 = scmp.ne.s32.totalorder %s207, %s208
      %p217 = scmp.eq.s32.totalorder %s29, 0
      %p218 = por %p216, %p217
      %p219 = scmp.ne.s32.totalorder %s207, %s208
      %p220 = scmp.eq.s32.totalorder %s30, 5
      %p221 = por %p219, %p220
      %p223 = scmp.ne.s32.totalorder %s208, %s222
      %p224 = scmp.eq.s32.totalorder %s30, 0
      %p225 = por %p223, %p224
      %s226 = ssub.s32 %s31, %s43
      %p227 = scmp.eq.s32.totalorder %s226, 0
      %s229 = sadd.s32 %s228, 1
      %s230 = scalar_select %p227, %s228, %s229
      %p233 = pneg %p227
      %p234 = scmp.eq.s32.totalorder %s24, 5
      %p235 = por %p233, %p234
      %p236 = scmp.ne.s32.totalorder %s228, %s231
      %p237 = scmp.eq.s32.totalorder %s24, 0
      %p238 = por %p236, %p237
      %p239 = scmp.ne.s32.totalorder %s228, %s231
      %p240 = scmp.eq.s32.totalorder %s29, 5
      %p241 = por %p239, %p240
      %p242 = scmp.ne.s32.totalorder %s231, %s232
      %p243 = scmp.eq.s32.totalorder %s29, 0
      %p244 = por %p242, %p243
      %p245 = scmp.ne.s32.totalorder %s231, %s232
      %p246 = scmp.eq.s32.totalorder %s30, 5
      %p247 = por %p245, %p246
      %p249 = scmp.ne.s32.totalorder %s232, %s248
      %p250 = scmp.eq.s32.totalorder %s30, 0
      %p251 = por %p249, %p250
      %p252 = scmp.le.s32.totalorder 1, %s24
      %p253 = scmp.lt.s32.totalorder %s24, 7
      %p254 = pnand %p252, %p253
      %p255 = pneg %p254
      // Predicated region
      $region9: #{tpu_custom_call.1} parent=5 // pred_check
        _
      $region10: #{tpu_custom_call.1} parent=5 // pred_check_branch
        %257 = sbr.rel (%p254) target = $region12
      $region11: #{tpu_custom_call.1} parent=5 // pred_region
        %s258 = ssub.s32 %s24, 1
        // Predicated region
        $region13: #{tpu_custom_call.1} parent=11 // pred_check
          %p259 = pneg %p113
        $region14: #{tpu_custom_call.1} parent=11 // pred_check_branch
          %261 = sbr.rel (%p259) target = $region16
        $region15: #{tpu_custom_call.1} parent=11 // pred_region
          %s263 = ssub.s32 6144, 6144
          %264 = vsyncadd [#allocation10], %s263
          %s265 = sshll.u32 [#allocation9], 4
          %s266 = int_to_ptr.vmem [resolvable:$true] %s265
          %271 = dma.hbm_to_vmem [thread:$0]  %s3, 6144, %s266, [#allocation10], 384, 384, 24
        $region16: #{tpu_custom_call.1} parent=11 // pred_fallthru
          _
        // Predicated region
        $region17: #{tpu_custom_call.1} parent=11 // pred_check
          %p272 = pneg %p134
        $region18: #{tpu_custom_call.1} parent=11 // pred_check_branch
          %274 = sbr.rel (%p272) target = $region20
        $region19: #{tpu_custom_call.1} parent=11 // pred_region
          %s276 = ssub.s32 6144, 6144
          %277 = vsyncadd [#allocation10], %s276
          %s278 = sshll.u32 [#allocation11], 4
          %s279 = int_to_ptr.vmem [resolvable:$true] %s278
          %284 = dma.hbm_to_vmem [thread:$0]  %s4, 6144, %s279, [#allocation10], 384, 384, 24
        $region20: #{tpu_custom_call.1} parent=11 // pred_fallthru
          _
        // Predicated region
        $region21: #{tpu_custom_call.1} parent=11 // pred_check
          %p285 = pneg %p155
        $region22: #{tpu_custom_call.1} parent=11 // pred_check_branch
          %287 = sbr.rel (%p285) target = $region24
        $region23: #{tpu_custom_call.1} parent=11 // pred_region
          _
        $region24: #{tpu_custom_call.1} parent=11 // pred_fallthru
          _
        // Predicated region
        $region25: #{tpu_custom_call.1} parent=11 // pred_check
          %p288 = pneg %p176
        $region26: #{tpu_custom_call.1} parent=11 // pred_check_branch
          %290 = sbr.rel (%p288) target = $region28
        $region27: #{tpu_custom_call.1} parent=11 // pred_region
          _
        $region28: #{tpu_custom_call.1} parent=11 // pred_fallthru
          _
        // Predicated region
        $region29: #{tpu_custom_call.1} parent=11 // pred_check
          %p291 = pneg %p197
        $region30: #{tpu_custom_call.1} parent=11 // pred_check_branch
          %293 = sbr.rel (%p291) target = $region32
        $region31: #{tpu_custom_call.1} parent=11 // pred_region
          %s295 = ssub.s32 2048, 2048
          %296 = vsyncadd [#allocation13], %s295
          %s297 = sshll.u32 [#allocation12], 4
          %s298 = int_to_ptr.vmem [resolvable:$true] %s297
          %303 = dma.hbm_to_vmem [thread:$0]  %s7, 2048, %s298, [#allocation13], 128, 128, 8
        $region32: #{tpu_custom_call.1} parent=11 // pred_fallthru
          _
        // Predicated region
        $region33: #{tpu_custom_call.1} parent=11 // pred_check
          %p304 = pneg %p218
        $region34: #{tpu_custom_call.1} parent=11 // pred_check_branch
          %306 = sbr.rel (%p304) target = $region36
        $region35: #{tpu_custom_call.1} parent=11 // pred_region
          _
        $region36: #{tpu_custom_call.1} parent=11 // pred_fallthru
          _
      $region12: #{tpu_custom_call.1} parent=5 // pred_fallthru
        _
      %p307 = scmp.lt.s32.totalorder %s24, 6
      // Predicated region
      $region37: #{tpu_custom_call.1} parent=5 // pred_check
        %p308 = pneg %p307
      $region38: #{tpu_custom_call.1} parent=5 // pred_check_branch
        %310 = sbr.rel (%p308) target = $region40
      $region39: #{tpu_custom_call.1} parent=5 // pred_region
        // Predicated region
        $region41: #{tpu_custom_call.1} parent=39 // pred_check
          %p311 = pneg %p60
        $region42: #{tpu_custom_call.1} parent=39 // pred_check_branch
          %313 = sbr.rel (%p311) target = $region44
        $region43: #{tpu_custom_call.1} parent=39 // pred_region
          %s314 = sand.u32 %s50, 1
          %s315 = scalar_lea.sflag [#allocation7], %s314
          %s316 = sand.u32 %s50, 1
          %s317 = smul.addr %s316, 24
          %s318 = scalar_lea.vmem [#allocation6], %s317
          %s319 = smul.u32 %s31, 3
          %s320 = sadd.s32 %s319, %s32
          %s321 = smul.u32 3, %s320
          %s323 = ssub.s32 384, 384
          %324 = vsyncadd %s315, %s323
          %s325 = smul.addr %s321, 128
          %s326 = scalar_lea.hbm %s1, %s325
          %s327 = sshll.u32 %s318, 4
          %s328 = int_to_ptr.vmem [resolvable:$true] %s327
          %333 = dma.hbm_to_vmem [thread:$0]  %s326, 384, %s328, %s315, 128, 128, 8
        $region44: #{tpu_custom_call.1} parent=39 // pred_fallthru
          _
        // Predicated region
        $region45: #{tpu_custom_call.1} parent=39 // pred_check
          %p334 = pneg %p86
        $region46: #{tpu_custom_call.1} parent=39 // pred_check_branch
          %336 = sbr.rel (%p334) target = $region48
        $region47: #{tpu_custom_call.1} parent=39 // pred_region
          %p337 = scmp.lt.s32.totalorder %s31, 1
          %s338 = scalar_select %p337, %s31, 1
          %s339 = smul.addr %s338, 8
          %s340 = scalar_lea.vmem %s2, %s339
        $region48: #{tpu_custom_call.1} parent=39 // pred_fallthru
          _
      $region40: #{tpu_custom_call.1} parent=5 // pred_fallthru
        _
      %p341 = scmp.le.s32.totalorder 1, %s24
      %p342 = scmp.lt.s32.totalorder %s24, 7
      %p343 = pnand %p341, %p342
      %p344 = pneg %p343
      // Predicated region
      $region49: #{tpu_custom_call.1} parent=5 // pred_check
        _
      $region50: #{tpu_custom_call.1} parent=5 // pred_check_branch
        %346 = sbr.rel (%p343) target = $region52
      $region51: #{tpu_custom_call.1} parent=5 // pred_region
        %s347 = ssub.s32 %s24, 1
        %s348 = sand.u32 %s53, 1
        %s349 = scalar_lea.sflag [#allocation7], %s348
        %s350 = sand.u32 %s53, 1
        %s351 = smul.addr %s350, 24
        %s352 = scalar_lea.vmem [#allocation6], %s351
        // Predicated region
        $region53: #{tpu_custom_call.1} parent=51 // pred_check
          %p353 = pneg %p66
        $region54: #{tpu_custom_call.1} parent=51 // pred_check_branch
          %355 = sbr.rel (%p353) target = $region56
        $region55: #{tpu_custom_call.1} parent=51 // pred_region
          %356 = dma.done %s349, 384
        $region56: #{tpu_custom_call.1} parent=51 // pred_fallthru
          _
        // Predicated region
        $region57: #{tpu_custom_call.1} parent=51 // pred_check
          %p357 = pneg %p113
        $region58: #{tpu_custom_call.1} parent=51 // pred_check_branch
          %359 = sbr.rel (%p357) target = $region60
        $region59: #{tpu_custom_call.1} parent=51 // pred_region
          %360 = dma.done [#allocation10], 6144
        $region60: #{tpu_custom_call.1} parent=51 // pred_fallthru
          _
        // Predicated region
        $region61: #{tpu_custom_call.1} parent=51 // pred_check
          %p361 = pneg %p134
        $region62: #{tpu_custom_call.1} parent=51 // pred_check_branch
          %363 = sbr.rel (%p361) target = $region64
        $region63: #{tpu_custom_call.1} parent=51 // pred_region
          %364 = dma.done [#allocation10], 6144
        $region64: #{tpu_custom_call.1} parent=51 // pred_fallthru
          _
        // Predicated region
        $region65: #{tpu_custom_call.1} parent=51 // pred_check
          %p365 = pneg %p197
        $region66: #{tpu_custom_call.1} parent=51 // pred_check_branch
          %367 = sbr.rel (%p365) target = $region68
        $region67: #{tpu_custom_call.1} parent=51 // pred_region
          %368 = dma.done [#allocation13], 2048
        $region68: #{tpu_custom_call.1} parent=51 // pred_fallthru
          _
        %s369 = sand.u32 %s53, 1
        %s370 = scalar_lea.sflag [#allocation7], %s369
        %s371 = sand.u32 %s53, 1
        %s372 = smul.addr %s371, 24
        %s373 = scalar_lea.vmem [#allocation6], %s372
        %p374 = pneg %p66
        %p375 = pneg %p63
        %p376 = scmp.lt.s32.totalorder %s33, 1
        %s377 = scalar_select %p376, %s33, 1
        %s378 = smul.addr %s377, 8
        %s379 = scalar_lea.vmem %s2, %s378
        %p380 = pneg %p92
        %p381 = pneg %p89
        %p382 = pneg %p113
        %p383 = pneg %p110
        %p384 = pneg %p134
        %p385 = pneg %p131
        %p386 = pneg %p155
        %p387 = pneg %p152
        %p388 = pneg %p176
        %p389 = pneg %p173
        %p390 = pneg %p197
        %p391 = pneg %p194
        %p392 = pneg %p218
        %p393 = pneg %p215
        %p394 = pneg %p244
        %p395 = pneg %p241
        %s396 = sand.u32 %s231, 1
        %s397 = scalar_lea.sflag [#allocation8], %s396
        %s398 = sand.u32 %s231, 1
        %s399 = smul.addr %s398, 8
        %s400 = scalar_lea.vmem [#allocation14], %s399
        %s401 = smul.u32 %s33, 3
        %s402 = sadd.s32 %s401, %s34
        %s403 = smul.u32 3, %s402
        %p404 = scmp.lt.s32.totalorder %s33, 1
        %s405 = scalar_select %p404, %s33, 1
        %s406 = smul.addr %s405, 8
        %s407 = scalar_lea.vmem %s2, %s406
        %v408 = vld [vmem:[%s352] sm:$0xff]
        %v409 = vld [vmem:[%s352 + $0x8] sm:$0xff]
        %v410 = vld [vmem:[%s352 + $0x10] sm:$0xff]
        %v411 = vld [vmem:[#allocation9] sm:$0xff]
        %v412 = vld [vmem:[#allocation9 + $0x8] sm:$0xff]
        %v413 = vld [vmem:[#allocation9 + $0x10] sm:$0xff]
        %v414 = vld [vmem:[#allocation9 + $0x18] sm:$0xff]
        %v415 = vld [vmem:[#allocation9 + $0x20] sm:$0xff]
        %v416 = vld [vmem:[#allocation9 + $0x28] sm:$0xff]
        %v417 = vld [vmem:[#allocation9 + $0x30] sm:$0xff]
        %v418 = vld [vmem:[#allocation9 + $0x38] sm:$0xff]
        %v419 = vld [vmem:[#allocation9 + $0x40] sm:$0xff]
        %v420 = vld [vmem:[#allocation9 + $0x48] sm:$0xff]
        %v421 = vld [vmem:[#allocation9 + $0x50] sm:$0xff]
        %v422 = vld [vmem:[#allocation9 + $0x58] sm:$0xff]
        %v423 = vld [vmem:[#allocation9 + $0x60] sm:$0xff]
        %v424 = vld [vmem:[#allocation9 + $0x68] sm:$0xff]
        %v425 = vld [vmem:[#allocation9 + $0x70] sm:$0xff]
        %v426 = vld [vmem:[#allocation9 + $0x78] sm:$0xff]
        %v427 = vld [vmem:[#allocation9 + $0x80] sm:$0xff]
        %v428 = vld [vmem:[#allocation9 + $0x88] sm:$0xff]
        %v429 = vld [vmem:[#allocation9 + $0x90] sm:$0xff]
        %v430 = vld [vmem:[#allocation9 + $0x98] sm:$0xff]
        %v431 = vld [vmem:[#allocation9 + $0xa0] sm:$0xff]
        %v432 = vld [vmem:[#allocation9 + $0xa8] sm:$0xff]
        %v433 = vld [vmem:[#allocation9 + $0xb0] sm:$0xff]
        %v434 = vld [vmem:[#allocation9 + $0xb8] sm:$0xff]
        %v435 = vld [vmem:[#allocation9 + $0xc0] sm:$0xff]
        %v436 = vld [vmem:[#allocation9 + $0xc8] sm:$0xff]
        %v437 = vld [vmem:[#allocation9 + $0xd0] sm:$0xff]
        %v438 = vld [vmem:[#allocation9 + $0xd8] sm:$0xff]
        %v439 = vld [vmem:[#allocation9 + $0xe0] sm:$0xff]
        %v440 = vld [vmem:[#allocation9 + $0xe8] sm:$0xff]
        %v441 = vld [vmem:[#allocation9 + $0xf0] sm:$0xff]
        %v442 = vld [vmem:[#allocation9 + $0xf8] sm:$0xff]
        %v443 = vld [vmem:[#allocation9 + $0x100] sm:$0xff]
        %v444 = vld [vmem:[#allocation9 + $0x108] sm:$0xff]
        %v445 = vld [vmem:[#allocation9 + $0x110] sm:$0xff]
        %v446 = vld [vmem:[#allocation9 + $0x118] sm:$0xff]
        %v447 = vld [vmem:[#allocation9 + $0x120] sm:$0xff]
        %v448 = vld [vmem:[#allocation9 + $0x128] sm:$0xff]
        %v449 = vld [vmem:[#allocation9 + $0x130] sm:$0xff]
        %v450 = vld [vmem:[#allocation9 + $0x138] sm:$0xff]
        %v451 = vld [vmem:[#allocation9 + $0x140] sm:$0xff]
        %v452 = vld [vmem:[#allocation9 + $0x148] sm:$0xff]
        %v453 = vld [vmem:[#allocation9 + $0x150] sm:$0xff]
        %v454 = vld [vmem:[#allocation9 + $0x158] sm:$0xff]
        %v455 = vld [vmem:[#allocation9 + $0x160] sm:$0xff]
        %v456 = vld [vmem:[#allocation9 + $0x168] sm:$0xff]
        %v457 = vld [vmem:[#allocation9 + $0x170] sm:$0xff]
        %v458 = vld [vmem:[#allocation9 + $0x178] sm:$0xff]
        %v459 = vld [vmem:[%s5] sm:$0x7]
        %v461 = vlaneseq
        %v462 = vshrl.u32 %v461, 7
        %v463 = vsub.s32 0, %v462
        %v464 = vrot.slane %v459, %v463
        %v465 = vlaneseq
        %v466 = vshrl.u32 %v465, 7
        %v467 = vsub.s32 1, %v466
        %v468 = vrot.slane %v459, %v467
        %v469 = vlaneseq
        %v470 = vshrl.u32 %v469, 7
        %v471 = vsub.s32 2, %v470
        %v472 = vrot.slane %v459, %v471
        %476 = vmatprep.subr.mxu0 %v412
        %477 = vmatpush1.msra.mxu0 %v411
        %478 = vmatprep.subr.mxu0 %v415
        %479 = vmatpush1.msra.mxu0 %v414
        %480 = vmatprep.subr.mxu0 %v418
        %481 = vmatpush1.msra.mxu0 %v417
        %482 = vmatprep.subr.mxu0 %v421
        %483 = vmatpush1.msra.mxu0 %v420
        %484 = vmatprep.subr.mxu0 %v424
        %485 = vmatpush1.msra.mxu0 %v423
        %486 = vmatprep.subr.mxu0 %v427
        %487 = vmatpush1.msra.mxu0 %v426
        %488 = vmatprep.subr.mxu0 %v430
        %489 = vmatpush1.msra.mxu0 %v429
        %490 = vmatprep.subr.mxu0 %v433
        %491 = vmatpush1.msra.mxu0 %v432
        %492 = vmatprep.subr.mxu0 %v436
        %493 = vmatpush1.msra.mxu0 %v435
        %494 = vmatprep.subr.mxu0 %v439
        %495 = vmatpush1.msra.mxu0 %v438
        %496 = vmatprep.subr.mxu0 %v442
        %497 = vmatpush1.msra.mxu0 %v441
        %498 = vmatprep.subr.mxu0 %v445
        %499 = vmatpush1.msra.mxu0 %v444
        %500 = vmatprep.subr.mxu0 %v448
        %501 = vmatpush1.msra.mxu0 %v447
        %502 = vmatprep.subr.mxu0 %v451
        %503 = vmatpush1.msra.mxu0 %v450
        %504 = vmatprep.subr.mxu0 %v454
        %505 = vmatpush1.msra.mxu0 %v453
        %506 = vmatprep.subr.mxu0 %v457
        %507 = vmatpush1.msra.mxu0 %v456
        %508 = vmatprep.subr.mxu0 0.0
        %509 = vmatpush1.msra.mxu0 0.0
        %510 = vmatprep.subr.mxu0 0.0
        %511 = vmatpush1.msra.mxu0 0.0
        %512 = vmatprep.subr.mxu0 0.0
        %513 = vmatpush1.msra.mxu0 0.0
        %514 = vmatprep.subr.mxu0 0.0
        %515 = vmatpush1.msra.mxu0 0.0
        %516 = vmatprep.subr.mxu0 0.0
        %517 = vmatpush1.msra.mxu0 0.0
        %518 = vmatprep.subr.mxu0 0.0
        %519 = vmatpush1.msra.mxu0 0.0
        %520 = vmatprep.subr.mxu0 0.0
        %521 = vmatpush1.msra.mxu0 0.0
        %522 = vmatprep.subr.mxu0 0.0
        %523 = vmatpush1.msra.mxu0 0.0
        %524 = vmatprep.subr.mxu0 0.0
        %525 = vmatpush1.msra.mxu0 0.0
        %526 = vmatprep.subr.mxu0 0.0
        %527 = vmatpush1.msra.mxu0 0.0
        %528 = vmatprep.subr.mxu0 0.0
        %529 = vmatpush1.msra.mxu0 0.0
        %530 = vmatprep.subr.mxu0 0.0
        %531 = vmatpush1.msra.mxu0 0.0
        %532 = vmatprep.subr.mxu0 0.0
        %533 = vmatpush1.msra.mxu0 0.0
        %534 = vmatprep.subr.mxu0 0.0
        %535 = vmatpush1.msra.mxu0 0.0
        %536 = vmatprep.subr.mxu0 0.0
        %537 = vmatpush1.msra.mxu0 0.0
        %538 = vmatprep.subr.mxu0 0.0
        %539 = vmatpush1.msra.mxu0 0.0
        %540 = vmatprep.mubr.f32.mxu0 0.0
        %541 = vmatmul.mubr.f32.gmra.mrb[0].mxu0 %v408
        %v542 = vpop.f32.mrb[0].mxu0
        %v543 = vadd.f32 %v464, %v542
        %v544 = vpop.f32.mrb[0].mxu0
        %v545 = vadd.f32 %v468, %v544
        %546 = vmatprep.mubr.f32.mxu0 0.0
        %547 = vmatmul.mubr.f32.gmra.mrb[0].mxu0 %v409
        %v548 = vpop.f32.mrb[0].mxu0
        %v549 = vadd.f32 %v464, %v548
        %v550 = vpop.f32.mrb[0].mxu0
        %v551 = vadd.f32 %v468, %v550
        %552 = vmatprep.mubr.f32.mxu0 0.0
        %553 = vmatmul.mubr.f32.gmra.mrb[0].mxu0 %v410
        %v554 = vpop.f32.mrb[0].mxu0
        %v555 = vadd.f32 %v464, %v554
        %v556 = vpop.f32.mrb[0].mxu0
        %v557 = vadd.f32 %v468, %v556
        %558 = vdwg.mxu0
        %559 = vmatprep.subr.mxu0 0.0
        %560 = vmatpush1.msra.mxu0 %v413
        %561 = vmatprep.subr.mxu0 0.0
        %562 = vmatpush1.msra.mxu0 %v416
        %563 = vmatprep.subr.mxu0 0.0
        %564 = vmatpush1.msra.mxu0 %v419
        %565 = vmatprep.subr.mxu0 0.0
        %566 = vmatpush1.msra.mxu0 %v422
        %567 = vmatprep.subr.mxu0 0.0
        %568 = vmatpush1.msra.mxu0 %v425
        %569 = vmatprep.subr.mxu0 0.0
        %570 = vmatpush1.msra.mxu0 %v428
        %571 = vmatprep.subr.mxu0 0.0
        %572 = vmatpush1.msra.mxu0 %v431
        %573 = vmatprep.subr.mxu0 0.0
        %574 = vmatpush1.msra.mxu0 %v434
        %575 = vmatprep.subr.mxu0 0.0
        %576 = vmatpush1.msra.mxu0 %v437
        %577 = vmatprep.subr.mxu0 0.0
        %578 = vmatpush1.msra.mxu0 %v440
        %579 = vmatprep.subr.mxu0 0.0
        %580 = vmatpush1.msra.mxu0 %v443
        %581 = vmatprep.subr.mxu0 0.0
        %582 = vmatpush1.msra.mxu0 %v446
        %583 = vmatprep.subr.mxu0 0.0
        %584 = vmatpush1.msra.mxu0 %v449
        %585 = vmatprep.subr.mxu0 0.0
        %586 = vmatpush1.msra.mxu0 %v452
        %587 = vmatprep.subr.mxu0 0.0
        %588 = vmatpush1.msra.mxu0 %v455
        %589 = vmatprep.subr.mxu0 0.0
        %590 = vmatpush1.msra.mxu0 %v458
        %591 = vmatprep.subr.mxu0 0.0
        %592 = vmatpush1.msra.mxu0 0.0
        %593 = vmatprep.subr.mxu0 0.0
        %594 = vmatpush1.msra.mxu0 0.0
        %595 = vmatprep.subr.mxu0 0.0
        %596 = vmatpush1.msra.mxu0 0.0
        %597 = vmatprep.subr.mxu0 0.0
        %598 = vmatpush1.msra.mxu0 0.0
        %599 = vmatprep.subr.mxu0 0.0
        %600 = vmatpush1.msra.mxu0 0.0
        %601 = vmatprep.subr.mxu0 0.0
        %602 = vmatpush1.msra.mxu0 0.0
        %603 = vmatprep.subr.mxu0 0.0
        %604 = vmatpush1.msra.mxu0 0.0
        %605 = vmatprep.subr.mxu0 0.0
        %606 = vmatpush1.msra.mxu0 0.0
        %607 = vmatprep.subr.mxu0 0.0
        %608 = vmatpush1.msra.mxu0 0.0
        %609 = vmatprep.subr.mxu0 0.0
        %610 = vmatpush1.msra.mxu0 0.0
        %611 = vmatprep.subr.mxu0 0.0
        %612 = vmatpush1.msra.mxu0 0.0
        %613 = vmatprep.subr.mxu0 0.0
        %614 = vmatpush1.msra.mxu0 0.0
        %615 = vmatprep.subr.mxu0 0.0
        %616 = vmatpush1.msra.mxu0 0.0
        %617 = vmatprep.subr.mxu0 0.0
        %618 = vmatpush1.msra.mxu0 0.0
        %619 = vmatprep.subr.mxu0 0.0
        %620 = vmatpush1.msra.mxu0 0.0
        %621 = vmatprep.subr.mxu0 0.0
        %622 = vmatpush1.msra.mxu0 0.0
        %623 = vmatprep.mubr.f32.mxu0 0.0
        %624 = vmatmul.mubr.f32.gmra.mrb[0].mxu0 %v408
        %v625 = vpop.f32.mrb[0].mxu0
        %v626 = vadd.f32 %v472, %v625
        %v627 = vpop.f32.mrb[0].mxu0
        %628 = vmatprep.mubr.f32.mxu0 0.0
        %629 = vmatmul.mubr.f32.gmra.mrb[0].mxu0 %v409
        %v630 = vpop.f32.mrb[0].mxu0
        %v631 = vadd.f32 %v472, %v630
        %v632 = vpop.f32.mrb[0].mxu0
        %633 = vmatprep.mubr.f32.mxu0 0.0
        %634 = vmatmul.mubr.f32.gmra.mrb[0].mxu0 %v410
        %v635 = vpop.f32.mrb[0].mxu0
        %v636 = vadd.f32 %v472, %v635
        %v637 = vpop.f32.mrb[0].mxu0
        %638 = vdwg.mxu0
        %639 = vst [vmem:[#allocation2] sm:$0xff] %v543
        %640 = vst [vmem:[#allocation2 + $0x8] sm:$0xff] %v545
        %641 = vst [vmem:[#allocation2 + $0x10] sm:$0xff] %v626
        %642 = vst [vmem:[#allocation2 + $0x18] sm:$0xff] %v549
        %643 = vst [vmem:[#allocation2 + $0x20] sm:$0xff] %v551
        %644 = vst [vmem:[#allocation2 + $0x28] sm:$0xff] %v631
        %645 = vst [vmem:[#allocation2 + $0x30] sm:$0xff] %v555
        %646 = vst [vmem:[#allocation2 + $0x38] sm:$0xff] %v557
        %647 = vst [vmem:[#allocation2 + $0x40] sm:$0xff] %v636
        %p648 = scmp.eq.s32.totalorder %s34, 0
        // Predicated region
        $region69: #{tpu_custom_call.1} parent=51 // pred_check
          %p649 = pneg %p648
        $region70: #{tpu_custom_call.1} parent=51 // pred_check_branch
          %651 = sbr.rel (%p649) target = $region72
        $region71: #{tpu_custom_call.1} parent=51 // pred_region
          %652 = vst [vmem:[#allocation3] sm:$0xff] 0.0
        $region72: #{tpu_custom_call.1} parent=51 // pred_fallthru
          _
        %v653 = vld [vmem:[%s407] sm:$0xff]
        %v654 = vld [vmem:[%s6] sm:$0x1]
        %v656 = vlaneseq
        %v657 = vshrl.u32 %v656, 7
        %v658 = vsub.s32 0, %v657
        %v659 = vrot.slane %v654, %v658
        %s661 = smul.u32 %s34, 3
        %s662 = sld [smem:[#allocation5]]
        %s663 = ssub.s32 %s662, %s661
        %p664 = scmp.gt.s32.totalorder %s663, 0
        %s665 = scalar_select %p664, %s663, 0
        %p666 = scmp.lt.s32.totalorder %s665, 3
        %s667 = scalar_select %p666, %s665, 3
        %v668 = vld [vmem:[#allocation3] sm:$0xff]
        // While loop
        $region73: #{tpu_custom_call.1} parent=51 // loop_pre_header
          _
        $region74: #{tpu_custom_call.1} parent=51 // loop_header
          %s670 = sphi 0, %s672
          %p671 = scmp.ge.s32.totalorder %s670, %s667
          %v675 = vphi %v668, %v903
        $region75: #{tpu_custom_call.1} parent=51 // loop_header_branch
          %674 = sbr.rel (%p671) target = $region79
        $region76: #{tpu_custom_call.1} parent=51 // loop_body
          %s676 = smul.u32 %s670, 8
          %s677 = sshra.s32 %s676, 3
          %s678 = sand.u32 %s676, 7
          %s679 = smul.u32 %s677, 3
          %s680 = smul.addr %s679, 8
          %s681 = scalar_lea.vmem [#allocation2], %s680
          %v682 = vld [vmem:[%s681] sm:$0xff]
          %v683 = vld [vmem:[%s681 + $0x8] sm:$0xff]
          %v684 = vld [vmem:[%s681 + $0x10] sm:$0xff]
          %v685 = vld [vmem:[#allocation11] sm:$0xff]
          %v686 = vld [vmem:[#allocation11 + $0x8] sm:$0xff]
          %v687 = vld [vmem:[#allocation11 + $0x10] sm:$0xff]
          %v688 = vld [vmem:[#allocation11 + $0x18] sm:$0xff]
          %v689 = vld [vmem:[#allocation11 + $0x20] sm:$0xff]
          %v690 = vld [vmem:[#allocation11 + $0x28] sm:$0xff]
          %v691 = vld [vmem:[#allocation11 + $0x30] sm:$0xff]
          %v692 = vld [vmem:[#allocation11 + $0x38] sm:$0xff]
          %v693 = vld [vmem:[#allocation11 + $0x40] sm:$0xff]
          %v694 = vld [vmem:[#allocation11 + $0x48] sm:$0xff]
          %v695 = vld [vmem:[#allocation11 + $0x50] sm:$0xff]
          %v696 = vld [vmem:[#allocation11 + $0x58] sm:$0xff]
          %v697 = vld [vmem:[#allocation11 + $0x60] sm:$0xff]
          %v698 = vld [vmem:[#allocation11 + $0x68] sm:$0xff]
          %v699 = vld [vmem:[#allocation11 + $0x70] sm:$0xff]
          %v700 = vld [vmem:[#allocation11 + $0x78] sm:$0xff]
          %v701 = vld [vmem:[#allocation11 + $0x80] sm:$0xff]
          %v702 = vld [vmem:[#allocation11 + $0x88] sm:$0xff]
          %v703 = vld [vmem:[#allocation11 + $0x90] sm:$0xff]
          %v704 = vld [vmem:[#allocation11 + $0x98] sm:$0xff]
          %v705 = vld [vmem:[#allocation11 + $0xa0] sm:$0xff]
          %v706 = vld [vmem:[#allocation11 + $0xa8] sm:$0xff]
          %v707 = vld [vmem:[#allocation11 + $0xb0] sm:$0xff]
          %v708 = vld [vmem:[#allocation11 + $0xb8] sm:$0xff]
          %v709 = vld [vmem:[#allocation11 + $0xc0] sm:$0xff]
          %v710 = vld [vmem:[#allocation11 + $0xc8] sm:$0xff]
          %v711 = vld [vmem:[#allocation11 + $0xd0] sm:$0xff]
          %v712 = vld [vmem:[#allocation11 + $0xd8] sm:$0xff]
          %v713 = vld [vmem:[#allocation11 + $0xe0] sm:$0xff]
          %v714 = vld [vmem:[#allocation11 + $0xe8] sm:$0xff]
          %v715 = vld [vmem:[#allocation11 + $0xf0] sm:$0xff]
          %v716 = vld [vmem:[#allocation11 + $0xf8] sm:$0xff]
          %v717 = vld [vmem:[#allocation11 + $0x100] sm:$0xff]
          %v718 = vld [vmem:[#allocation11 + $0x108] sm:$0xff]
          %v719 = vld [vmem:[#allocation11 + $0x110] sm:$0xff]
          %v720 = vld [vmem:[#allocation11 + $0x118] sm:$0xff]
          %v721 = vld [vmem:[#allocation11 + $0x120] sm:$0xff]
          %v722 = vld [vmem:[#allocation11 + $0x128] sm:$0xff]
          %v723 = vld [vmem:[#allocation11 + $0x130] sm:$0xff]
          %v724 = vld [vmem:[#allocation11 + $0x138] sm:$0xff]
          %v725 = vld [vmem:[#allocation11 + $0x140] sm:$0xff]
          %v726 = vld [vmem:[#allocation11 + $0x148] sm:$0xff]
          %v727 = vld [vmem:[#allocation11 + $0x150] sm:$0xff]
          %v728 = vld [vmem:[#allocation11 + $0x158] sm:$0xff]
          %v729 = vld [vmem:[#allocation11 + $0x160] sm:$0xff]
          %v730 = vld [vmem:[#allocation11 + $0x168] sm:$0xff]
          %v731 = vld [vmem:[#allocation11 + $0x170] sm:$0xff]
          %v732 = vld [vmem:[#allocation11 + $0x178] sm:$0xff]
          %733 = vmatprep.subr.mxu0 %v686
          %734 = vmatpush1.msra.mxu0 %v685
          %735 = vmatprep.subr.mxu0 %v689
          %736 = vmatpush1.msra.mxu0 %v688
          %737 = vmatprep.subr.mxu0 %v692
          %738 = vmatpush1.msra.mxu0 %v691
          %739 = vmatprep.subr.mxu0 %v695
          %740 = vmatpush1.msra.mxu0 %v694
          %741 = vmatprep.subr.mxu0 %v698
          %742 = vmatpush1.msra.mxu0 %v697
          %743 = vmatprep.subr.mxu0 %v701
          %744 = vmatpush1.msra.mxu0 %v700
          %745 = vmatprep.subr.mxu0 %v704
          %746 = vmatpush1.msra.mxu0 %v703
          %747 = vmatprep.subr.mxu0 %v707
          %748 = vmatpush1.msra.mxu0 %v706
          %749 = vmatprep.subr.mxu0 %v710
          %750 = vmatpush1.msra.mxu0 %v709
          %751 = vmatprep.subr.mxu0 %v713
          %752 = vmatpush1.msra.mxu0 %v712
          %753 = vmatprep.subr.mxu0 %v716
          %754 = vmatpush1.msra.mxu0 %v715
          %755 = vmatprep.subr.mxu0 %v719
          %756 = vmatpush1.msra.mxu0 %v718
          %757 = vmatprep.subr.mxu0 %v722
          %758 = vmatpush1.msra.mxu0 %v721
          %759 = vmatprep.subr.mxu0 %v725
          %760 = vmatpush1.msra.mxu0 %v724
          %761 = vmatprep.subr.mxu0 %v728
          %762 = vmatpush1.msra.mxu0 %v727
          %763 = vmatprep.subr.mxu0 %v731
          %764 = vmatpush1.msra.mxu0 %v730
          %765 = vmatprep.subr.mxu0 0.0
          %766 = vmatpush1.msra.mxu0 0.0
          %767 = vmatprep.subr.mxu0 0.0
          %768 = vmatpush1.msra.mxu0 0.0
          %769 = vmatprep.subr.mxu0 0.0
          %770 = vmatpush1.msra.mxu0 0.0
          %771 = vmatprep.subr.mxu0 0.0
          %772 = vmatpush1.msra.mxu0 0.0
          %773 = vmatprep.subr.mxu0 0.0
          %774 = vmatpush1.msra.mxu0 0.0
          %775 = vmatprep.subr.mxu0 0.0
          %776 = vmatpush1.msra.mxu0 0.0
          %777 = vmatprep.subr.mxu0 0.0
          %778 = vmatpush1.msra.mxu0 0.0
          %779 = vmatprep.subr.mxu0 0.0
          %780 = vmatpush1.msra.mxu0 0.0
          %781 = vmatprep.subr.mxu0 0.0
          %782 = vmatpush1.msra.mxu0 0.0
          %783 = vmatprep.subr.mxu0 0.0
          %784 = vmatpush1.msra.mxu0 0.0
          %785 = vmatprep.subr.mxu0 0.0
          %786 = vmatpush1.msra.mxu0 0.0
          %787 = vmatprep.subr.mxu0 0.0
          %788 = vmatpush1.msra.mxu0 0.0
          %789 = vmatprep.subr.mxu0 0.0
          %790 = vmatpush1.msra.mxu0 0.0
          %791 = vmatprep.subr.mxu0 0.0
          %792 = vmatpush1.msra.mxu0 0.0
          %793 = vmatprep.subr.mxu0 0.0
          %794 = vmatpush1.msra.mxu0 0.0
          %795 = vmatprep.subr.mxu0 0.0
          %796 = vmatpush1.msra.mxu0 0.0
          %797 = vmatprep.mubr.f32.mxu0 0.0
          %798 = vmatmul.mubr.f32.gmra.mrb[0].mxu0 %v675
          %v799 = vpop.f32.mrb[0].mxu0
          %v800 = vadd.f32 0.0, %v799
          %v801 = vpop.f32.mrb[0].mxu0
          %v802 = vadd.f32 0.0, %v801
          %803 = vdwg.mxu0
          %804 = vmatprep.subr.mxu0 0.0
          %805 = vmatpush1.msra.mxu0 %v687
          %806 = vmatprep.subr.mxu0 0.0
          %807 = vmatpush1.msra.mxu0 %v690
          %808 = vmatprep.subr.mxu0 0.0
          %809 = vmatpush1.msra.mxu0 %v693
          %810 = vmatprep.subr.mxu0 0.0
          %811 = vmatpush1.msra.mxu0 %v696
          %812 = vmatprep.subr.mxu0 0.0
          %813 = vmatpush1.msra.mxu0 %v699
          %814 = vmatprep.subr.mxu0 0.0
          %815 = vmatpush1.msra.mxu0 %v702
          %816 = vmatprep.subr.mxu0 0.0
          %817 = vmatpush1.msra.mxu0 %v705
          %818 = vmatprep.subr.mxu0 0.0
          %819 = vmatpush1.msra.mxu0 %v708
          %820 = vmatprep.subr.mxu0 0.0
          %821 = vmatpush1.msra.mxu0 %v711
          %822 = vmatprep.subr.mxu0 0.0
          %823 = vmatpush1.msra.mxu0 %v714
          %824 = vmatprep.subr.mxu0 0.0
          %825 = vmatpush1.msra.mxu0 %v717
          %826 = vmatprep.subr.mxu0 0.0
          %827 = vmatpush1.msra.mxu0 %v720
          %828 = vmatprep.subr.mxu0 0.0
          %829 = vmatpush1.msra.mxu0 %v723
          %830 = vmatprep.subr.mxu0 0.0
          %831 = vmatpush1.msra.mxu0 %v726
          %832 = vmatprep.subr.mxu0 0.0
          %833 = vmatpush1.msra.mxu0 %v729
          %834 = vmatprep.subr.mxu0 0.0
          %835 = vmatpush1.msra.mxu0 %v732
          %836 = vmatprep.subr.mxu0 0.0
          %837 = vmatpush1.msra.mxu0 0.0
          %838 = vmatprep.subr.mxu0 0.0
          %839 = vmatpush1.msra.mxu0 0.0
          %840 = vmatprep.subr.mxu0 0.0
          %841 = vmatpush1.msra.mxu0 0.0
          %842 = vmatprep.subr.mxu0 0.0
          %843 = vmatpush1.msra.mxu0 0.0
          %844 = vmatprep.subr.mxu0 0.0
          %845 = vmatpush1.msra.mxu0 0.0
          %846 = vmatprep.subr.mxu0 0.0
          %847 = vmatpush1.msra.mxu0 0.0
          %848 = vmatprep.subr.mxu0 0.0
          %849 = vmatpush1.msra.mxu0 0.0
          %850 = vmatprep.subr.mxu0 0.0
          %851 = vmatpush1.msra.mxu0 0.0
          %852 = vmatprep.subr.mxu0 0.0
          %853 = vmatpush1.msra.mxu0 0.0
          %854 = vmatprep.subr.mxu0 0.0
          %855 = vmatpush1.msra.mxu0 0.0
          %856 = vmatprep.subr.mxu0 0.0
          %857 = vmatpush1.msra.mxu0 0.0
          %858 = vmatprep.subr.mxu0 0.0
          %859 = vmatpush1.msra.mxu0 0.0
          %860 = vmatprep.subr.mxu0 0.0
          %861 = vmatpush1.msra.mxu0 0.0
          %862 = vmatprep.subr.mxu0 0.0
          %863 = vmatpush1.msra.mxu0 0.0
          %864 = vmatprep.subr.mxu0 0.0
          %865 = vmatpush1.msra.mxu0 0.0
          %866 = vmatprep.subr.mxu0 0.0
          %867 = vmatpush1.msra.mxu0 0.0
          %868 = vmatprep.mubr.f32.mxu0 0.0
          %869 = vmatmul.mubr.f32.gmra.mrb[0].mxu0 %v675
          %v870 = vpop.f32.mrb[0].mxu0
          %v871 = vadd.f32 0.0, %v870
          %v872 = vpop.f32.mrb[0].mxu0
          %873 = vdwg.mxu0
          %v874 = vadd.f32 %v682, %v800
          %v875 = vadd.f32 %v683, %v802
          %v876 = vxor.u32 %v874, 2147483648
          %v877 = vxor.u32 %v875, 2147483648
          %v878 = vmul.f32 %v876, 1.442695
          %v879 = vpow.pop %v878
          %v880 = vmul.f32 %v877, 1.442695
          %v881 = vpow.pop %v880
          %v882 = vadd.f32 %v879, 1.0
          %v883 = vadd.f32 %v881, 1.0
          %v884 = vrcp.pop %v882
          %v885 = vmul.f32 1.0, %v884
          %v886 = vrcp.pop %v883
          %v887 = vmul.f32 1.0, %v886
          %v888 = vadd.f32 %v871, %v659
          %v889 = vmul.f32 %v885, %v888
          %v890 = vadd.f32 %v684, %v889
          %v891 = vtanh.pop %v890
          %v892 = vsub.f32 %v675, %v891
          %v893 = vmul.f32 %v887, %v892
          %v894 = vadd.f32 %v891, %v893
          %s895 = sadd.s32 %s661, %s670
          %v896 = vstv %s895
          %vm897 = vcmp.gt.s32.totalorder %v653, %v896
          %v898 = vsel %vm897, 1, 0
          %899 = vset.pattern.permute.xlu0 0
          %900 = vperm.xlu0 %899, %v898
          %v901 = vpop.permute.xlu0 %900
          %vm902 = vcmp.eq.s32.totalorder %v901, 1
          %v903 = vsel %vm902, %v894, %v675
        $region77: #{tpu_custom_call.1} parent=51 // loop_footer
          %s672 = sadd.s32 %s670, 1
        $region78: #{tpu_custom_call.1} parent=51 // loop_footer_branch
          %669 = sbr.rel target = $region74
        $region79: #{tpu_custom_call.1} parent=51 // loop_exit
          _
        %904 = vst [vmem:[#allocation3] sm:$0xff] %v675
        %p905 = scmp.eq.s32.totalorder %s34, 2
        // Predicated region
        $region80: #{tpu_custom_call.1} parent=51 // pred_check
          %p906 = pneg %p905
        $region81: #{tpu_custom_call.1} parent=51 // pred_check_branch
          %908 = sbr.rel (%p906) target = $region83
        $region82: #{tpu_custom_call.1} parent=51 // pred_region
          %v909 = vld [vmem:[#allocation12] sm:$0xff]
          %v910 = vld [vmem:[#allocation12 + $0x8] sm:$0xff]
          %v911 = vld [vmem:[#allocation12 + $0x10] sm:$0xff]
          %v912 = vld [vmem:[#allocation12 + $0x18] sm:$0xff]
          %v913 = vld [vmem:[#allocation12 + $0x20] sm:$0xff]
          %v914 = vld [vmem:[#allocation12 + $0x28] sm:$0xff]
          %v915 = vld [vmem:[#allocation12 + $0x30] sm:$0xff]
          %v916 = vld [vmem:[#allocation12 + $0x38] sm:$0xff]
          %v917 = vld [vmem:[#allocation12 + $0x40] sm:$0xff]
          %v918 = vld [vmem:[#allocation12 + $0x48] sm:$0xff]
          %v919 = vld [vmem:[#allocation12 + $0x50] sm:$0xff]
          %v920 = vld [vmem:[#allocation12 + $0x58] sm:$0xff]
          %v921 = vld [vmem:[#allocation12 + $0x60] sm:$0xff]
          %v922 = vld [vmem:[#allocation12 + $0x68] sm:$0xff]
          %v923 = vld [vmem:[#allocation12 + $0x70] sm:$0xff]
          %v924 = vld [vmem:[#allocation12 + $0x78] sm:$0xff]
          %v925 = vld [vmem:[%s8] sm:$0x1]
          %v927 = vlaneseq
          %v928 = vshrl.u32 %v927, 7
          %v929 = vsub.s32 0, %v928
          %v930 = vrot.slane %v925, %v929
          %932 = vmatprep.subr.mxu0 0.0
          %933 = vmatpush1.msra.mxu0 %v909
          %934 = vmatprep.subr.mxu0 0.0
          %935 = vmatpush1.msra.mxu0 %v910
          %936 = vmatprep.subr.mxu0 0.0
          %937 = vmatpush1.msra.mxu0 %v911
          %938 = vmatprep.subr.mxu0 0.0
          %939 = vmatpush1.msra.mxu0 %v912
          %940 = vmatprep.subr.mxu0 0.0
          %941 = vmatpush1.msra.mxu0 %v913
          %942 = vmatprep.subr.mxu0 0.0
          %943 = vmatpush1.msra.mxu0 %v914
          %944 = vmatprep.subr.mxu0 0.0
          %945 = vmatpush1.msra.mxu0 %v915
          %946 = vmatprep.subr.mxu0 0.0
          %947 = vmatpush1.msra.mxu0 %v916
          %948 = vmatprep.subr.mxu0 0.0
          %949 = vmatpush1.msra.mxu0 %v917
          %950 = vmatprep.subr.mxu0 0.0
          %951 = vmatpush1.msra.mxu0 %v918
          %952 = vmatprep.subr.mxu0 0.0
          %953 = vmatpush1.msra.mxu0 %v919
          %954 = vmatprep.subr.mxu0 0.0
          %955 = vmatpush1.msra.mxu0 %v920
          %956 = vmatprep.subr.mxu0 0.0
          %957 = vmatpush1.msra.mxu0 %v921
          %958 = vmatprep.subr.mxu0 0.0
          %959 = vmatpush1.msra.mxu0 %v922
          %960 = vmatprep.subr.mxu0 0.0
          %961 = vmatpush1.msra.mxu0 %v923
          %962 = vmatprep.subr.mxu0 0.0
          %963 = vmatpush1.msra.mxu0 %v924
          %964 = vmatprep.subr.mxu0 0.0
          %965 = vmatpush1.msra.mxu0 0.0
          %966 = vmatprep.subr.mxu0 0.0
          %967 = vmatpush1.msra.mxu0 0.0
          %968 = vmatprep.subr.mxu0 0.0
          %969 = vmatpush1.msra.mxu0 0.0
          %970 = vmatprep.subr.mxu0 0.0
          %971 = vmatpush1.msra.mxu0 0.0
          %972 = vmatprep.subr.mxu0 0.0
          %973 = vmatpush1.msra.mxu0 0.0
          %974 = vmatprep.subr.mxu0 0.0
          %975 = vmatpush1.msra.mxu0 0.0
          %976 = vmatprep.subr.mxu0 0.0
          %977 = vmatpush1.msra.mxu0 0.0
          %978 = vmatprep.subr.mxu0 0.0
          %979 = vmatpush1.msra.mxu0 0.0
          %980 = vmatprep.subr.mxu0 0.0
          %981 = vmatpush1.msra.mxu0 0.0
          %982 = vmatprep.subr.mxu0 0.0
          %983 = vmatpush1.msra.mxu0 0.0
          %984 = vmatprep.subr.mxu0 0.0
          %985 = vmatpush1.msra.mxu0 0.0
          %986 = vmatprep.subr.mxu0 0.0
          %987 = vmatpush1.msra.mxu0 0.0
          %988 = vmatprep.subr.mxu0 0.0
          %989 = vmatpush1.msra.mxu0 0.0
          %990 = vmatprep.subr.mxu0 0.0
          %991 = vmatpush1.msra.mxu0 0.0
          %992 = vmatprep.subr.mxu0 0.0
          %993 = vmatpush1.msra.mxu0 0.0
          %994 = vmatprep.subr.mxu0 0.0
          %995 = vmatpush1.msra.mxu0 0.0
          %996 = vmatprep.mubr.f32.mxu0 0.0
          %997 = vmatmul.mubr.f32.gmra.mrb[0].mxu0 %v675
          %v998 = vpop.f32.mrb[0].mxu0
          %v999 = vadd.f32 %v930, %v998
          %v1000 = vpop.f32.mrb[0].mxu0
          %1001 = vdwg.mxu0
          %1002 = vst [vmem:[%s400] sm:$0xff] %v999
        $region83: #{tpu_custom_call.1} parent=51 // pred_fallthru
          _
        %s1003 = sand.u32 %s231, 1
        %s1004 = scalar_lea.sflag [#allocation8], %s1003
        %s1005 = sand.u32 %s231, 1
        %s1006 = smul.addr %s1005, 8
        %s1007 = scalar_lea.vmem [#allocation14], %s1006
        // Predicated region
        $region84: #{tpu_custom_call.1} parent=51 // pred_check
          %p1008 = pneg %p241
        $region85: #{tpu_custom_call.1} parent=51 // pred_check_branch
          %1010 = sbr.rel (%p1008) target = $region87
        $region86: #{tpu_custom_call.1} parent=51 // pred_region
          %s1012 = ssub.s32 128, 128
          %1013 = vsyncadd %s1004, %s1012
          %s1014 = smul.addr %s33, 128
          %s1015 = scalar_lea.hbm %s9, %s1014
          %s1017 = sshll.u32 %s1007, 4
          %s1018 = int_to_ptr.vmem [resolvable:$true] %s1017
          %1020 = dma.vmem_to_hbm [thread:$0]  %s1018, 128, %s1015, %s1004
        $region87: #{tpu_custom_call.1} parent=51 // pred_fallthru
          _
      $region52: #{tpu_custom_call.1} parent=5 // pred_fallthru
        _
      %p1021 = scmp.le.s32.totalorder 2, %s24
      // Predicated region
      $region88: #{tpu_custom_call.1} parent=5 // pred_check
        %p1022 = pneg %p1021
      $region89: #{tpu_custom_call.1} parent=5 // pred_check_branch
        %1024 = sbr.rel (%p1022) target = $region91
      $region90: #{tpu_custom_call.1} parent=5 // pred_region
        %s1025 = ssub.s32 %s24, 2
        // Predicated region
        $region92: #{tpu_custom_call.1} parent=90 // pred_check
          %p1026 = pneg %p247
        $region93: #{tpu_custom_call.1} parent=90 // pred_check_branch
          %1028 = sbr.rel (%p1026) target = $region95
        $region94: #{tpu_custom_call.1} parent=90 // pred_region
          %s1029 = sand.u32 %s232, 1
          %s1030 = scalar_lea.sflag [#allocation8], %s1029
          %s1031 = sand.u32 %s232, 1
          %s1032 = smul.addr %s1031, 8
          %s1033 = scalar_lea.vmem [#allocation14], %s1032
          %1034 = dma.done %s1030, 128
        $region95: #{tpu_custom_call.1} parent=90 // pred_fallthru
          _
      $region91: #{tpu_custom_call.1} parent=5 // pred_fallthru
        _
    $region6: #{tpu_custom_call.1} parent=1 // loop_footer
      %s28 = sadd.s32 1, %s24
    $region7: #{tpu_custom_call.1} parent=1 // loop_footer_branch
      %23 = sbr.rel target = $region3
    $region8: #{tpu_custom_call.1} parent=1 // loop_exit
      _
    %1035 = vsyncpa [#allocation7], 1
    %s1036 = scalar_lea.sflag [#allocation7], 1
    %1037 = vsyncpa %s1036, 1
    %1038 = vsyncpa [#allocation10], 1
    %1039 = vsyncpa [#allocation13], 1
    %1040 = vsyncpa [#allocation8], 1
    %s1041 = scalar_lea.sflag [#allocation8], 1
    %1042 = vsyncpa %s1041, 1

</llo_original>
